<compile_context>
chip_gen: v6e
topology: v6e:2x2x1
jax: 0.10.0
libtpu: 0.0.40
codegen_flags: <defaults>
</compile_context>

<pallas_src>
import functools

import jax
import jax.numpy as jnp
from jax.experimental import pallas as pl
from jax.experimental.pallas import tpu as pltpu


def _ode_rk4_kernel(x_ref, w1_ref, b1_ref, w2_ref, b2_ref, out_ref, *, h):
    """One RK4 step of dx/dt = MLP(x) over [0, h]; writes full x_next block."""
    x = x_ref[...]                      # (TB, D) f32
    w1 = w1_ref[...]                    # (D, H)  resident across grid steps
    b1 = b1_ref[...]                    # (1, H)
    w2 = w2_ref[...]                    # (H, D)
    b2 = b2_ref[...]                    # (1, D)

    def f(y):
        hdn = jnp.tanh(jnp.dot(y, w1, preferred_element_type=jnp.float32) + b1)
        return jnp.dot(hdn, w2, preferred_element_type=jnp.float32) + b2

    k1 = f(x)
    k2 = f(x + (h * 0.5) * k1)
    k3 = f(x + (h * 0.5) * k2)
    k4 = f(x + h * k3)

    # Lane-dense full-width store; column truncation happens in the wrapper.
    out_ref[...] = x + (h / 6.0) * (k1 + 2.0 * k2 + 2.0 * k3 + k4)


def ode_forward(x, w1, b1, w2, b2, h, *, tb_max=512):
    """Pallas-backed equivalent of ODE.forward for an RK4 fixed-step odeint."""
    B, D = x.shape
    H = w1.shape[1]
    d_f = D // 3                        # == len(x[0] + 1) // 3 in the reference
    d_keep = D - d_f

    # Batch tile: whole batch when small; otherwise a fixed multiple-of-8 tile
    # so the grid pipelines x tiles while the weights stay pinned in VMEM.
    tb = B if B <= tb_max else tb_max
    grid = (pl.cdiv(B, tb),)

    kernel = functools.partial(_ode_rk4_kernel, h=float(h))

    out_full = pl.pallas_call(
        kernel,
        out_shape=jax.ShapeDtypeStruct((B, D), jnp.float32),
        grid_spec=pltpu.PrefetchScalarGridSpec(
            num_scalar_prefetch=0,
            grid=grid,
            in_specs=[
                pl.BlockSpec((tb, D), lambda i: (i, 0)),   # x: tiled over batch
                pl.BlockSpec((D, H), lambda i: (0, 0)),    # W1: resident
                pl.BlockSpec((1, H), lambda i: (0, 0)),    # b1: resident
                pl.BlockSpec((H, D), lambda i: (0, 0)),    # W2: resident
                pl.BlockSpec((1, D), lambda i: (0, 0)),    # b2: resident
            ],
            out_specs=pl.BlockSpec((tb, D), lambda i: (i, 0)),
        ),
        compiler_params=pltpu.CompilerParams(
            dimension_semantics=("parallel",),             # megacore on v7x
            vmem_limit_bytes=32 * 1024 * 1024,
        ),
    )(x, w1, b1.reshape(1, -1), w2, b2.reshape(1, -1))

    # Drop the last d_f columns outside the kernel (free XLA slice), then
    # torch.squeeze equivalent.
    return jnp.squeeze(out_full[:, :d_keep])


def reference_forward(x, w1, b1, w2, b2, h):
    """Pure-JAX reference (same math) for a correctness check."""
    def f(y):
        return jnp.tanh(y @ w1 + b1) @ w2 + b2
    k1 = f(x)
    k2 = f(x + 0.5 * h * k1)
    k3 = f(x + 0.5 * h * k2)
    k4 = f(x + h * k3)
    x_next = x + (h / 6.0) * (k1 + 2.0 * k2 + 2.0 * k3 + k4)
    d_f = x.shape[1] // 3
    return jnp.squeeze(x_next[:, : x.shape[1] - d_f])


if __name__ == "__main__":
    key = jax.random.PRNGKey(0)
    k_x, k_w1, k_b1, k_w2, k_b2 = jax.random.split(key, 5)

    B = 8          # batch
    D = 12         # state dimension (=> d_f = 4, output keeps 8 columns)
    H = 32         # hidden width of the synthetic vector-field MLP
    h_step = 0.1   # integration horizon

    x = jax.random.normal(k_x, (B, D), dtype=jnp.float32)
    w1 = 0.1 * jax.random.normal(k_w1, (D, H), dtype=jnp.float32)
    b1 = 0.1 * jax.random.normal(k_b1, (H,), dtype=jnp.float32)
    w2 = 0.1 * jax.random.normal(k_w2, (H, D), dtype=jnp.float32)
    b2 = 0.1 * jax.random.normal(k_b2, (D,), dtype=jnp.float32)

    out = ode_forward(x, w1, b1, w2, b2, h_step)
    out = jax.block_until_ready(out)

    ref = reference_forward(x, w1, b1, w2, b2, h_step)
    assert out.shape == (B, D - D // 3), out.shape
    assert jnp.allclose(out, ref, atol=1e-5, rtol=1e-5), "mismatch vs reference"

    print("KERNEL_OK")
</pallas_src>

<mosaic_0001>
module attributes {stable_mosaic.version = 11 : i64} {
  func.func @_ode_rk4_kernel(%arg0: i32, %arg1: memref<8x12xf32, #tpu.memory_space<vmem>>, %arg2: memref<12x32xf32, #tpu.memory_space<vmem>>, %arg3: memref<1x32xf32, #tpu.memory_space<vmem>>, %arg4: memref<32x12xf32, #tpu.memory_space<vmem>>, %arg5: memref<1x12xf32, #tpu.memory_space<vmem>>, %arg6: memref<8x12xf32, #tpu.memory_space<vmem>>) attributes {dimension_semantics = [#tpu.dimension_semantics<parallel>], iteration_bounds = array<i64: 1>, scalar_prefetch = 0 : i64, scratch_operands = 0 : i64, tpu.core_type = #tpu.core_type<tc>, window_params = [{transform_indices = @transform_0, window_bounds = array<i64: 8, 12>}, {pipeline_mode = #tpu.pipeline_mode<synchronous>, transform_indices = @transform_1, window_bounds = array<i64: 12, 32>}, {pipeline_mode = #tpu.pipeline_mode<synchronous>, transform_indices = @transform_2, window_bounds = array<i64: 1, 32>}, {pipeline_mode = #tpu.pipeline_mode<synchronous>, transform_indices = @transform_3, window_bounds = array<i64: 32, 12>}, {pipeline_mode = #tpu.pipeline_mode<synchronous>, transform_indices = @transform_4, window_bounds = array<i64: 1, 12>}, {transform_indices = @transform_5, window_bounds = array<i64: 8, 12>}]} {
    %c0 = arith.constant 0 : index
    %c0_0 = arith.constant 0 : index
    %0 = vector.load %arg1[%c0, %c0_0] : memref<8x12xf32, #tpu.memory_space<vmem>>, vector<8x12xf32>
    %c0_1 = arith.constant 0 : index
    %c0_2 = arith.constant 0 : index
    %1 = vector.load %arg2[%c0_1, %c0_2] : memref<12x32xf32, #tpu.memory_space<vmem>>, vector<12x32xf32>
    %c0_3 = arith.constant 0 : index
    %c0_4 = arith.constant 0 : index
    %2 = vector.load %arg3[%c0_3, %c0_4] : memref<1x32xf32, #tpu.memory_space<vmem>>, vector<1x32xf32>
    %c0_5 = arith.constant 0 : index
    %c0_6 = arith.constant 0 : index
    %3 = vector.load %arg4[%c0_5, %c0_6] : memref<32x12xf32, #tpu.memory_space<vmem>>, vector<32x12xf32>
    %c0_7 = arith.constant 0 : index
    %c0_8 = arith.constant 0 : index
    %4 = vector.load %arg5[%c0_7, %c0_8] : memref<1x12xf32, #tpu.memory_space<vmem>>, vector<1x12xf32>
    %cst = arith.constant dense<0.000000e+00> : vector<8x32xf32>
    %5 = tpu.matmul %0, %1, %cst {dimension_numbers = #tpu.dot_dimension_numbers<[1], [0], [0], [1], [0, 0, 1, 1], [], []>} : vector<8x12xf32>, vector<12x32xf32>, vector<8x32xf32> -> vector<8x32xf32>
    %6 = vector.broadcast %2 : vector<1x32xf32> to vector<8x32xf32>
    %7 = arith.addf %5, %6 : vector<8x32xf32>
    %8 = math.tanh %7 : vector<8x32xf32>
    %cst_9 = arith.constant dense<0.000000e+00> : vector<8x12xf32>
    %9 = tpu.matmul %8, %3, %cst_9 {dimension_numbers = #tpu.dot_dimension_numbers<[1], [0], [0], [1], [0, 0, 1, 1], [], []>} : vector<8x32xf32>, vector<32x12xf32>, vector<8x12xf32> -> vector<8x12xf32>
    %10 = vector.broadcast %4 : vector<1x12xf32> to vector<8x12xf32>
    %11 = arith.addf %9, %10 : vector<8x12xf32>
    %cst_10 = arith.constant 5.000000e-02 : f32
    %12 = vector.broadcast %cst_10 : f32 to vector<8x12xf32>
    %13 = arith.mulf %12, %11 : vector<8x12xf32>
    %14 = arith.addf %0, %13 : vector<8x12xf32>
    %cst_11 = arith.constant dense<0.000000e+00> : vector<8x32xf32>
    %15 = tpu.matmul %14, %1, %cst_11 {dimension_numbers = #tpu.dot_dimension_numbers<[1], [0], [0], [1], [0, 0, 1, 1], [], []>} : vector<8x12xf32>, vector<12x32xf32>, vector<8x32xf32> -> vector<8x32xf32>
    %16 = vector.broadcast %2 : vector<1x32xf32> to vector<8x32xf32>
    %17 = arith.addf %15, %16 : vector<8x32xf32>
    %18 = math.tanh %17 : vector<8x32xf32>
    %cst_12 = arith.constant dense<0.000000e+00> : vector<8x12xf32>
    %19 = tpu.matmul %18, %3, %cst_12 {dimension_numbers = #tpu.dot_dimension_numbers<[1], [0], [0], [1], [0, 0, 1, 1], [], []>} : vector<8x32xf32>, vector<32x12xf32>, vector<8x12xf32> -> vector<8x12xf32>
    %20 = vector.broadcast %4 : vector<1x12xf32> to vector<8x12xf32>
    %21 = arith.addf %19, %20 : vector<8x12xf32>
    %cst_13 = arith.constant 5.000000e-02 : f32
    %22 = vector.broadcast %cst_13 : f32 to vector<8x12xf32>
    %23 = arith.mulf %22, %21 : vector<8x12xf32>
    %24 = arith.addf %0, %23 : vector<8x12xf32>
    %cst_14 = arith.constant dense<0.000000e+00> : vector<8x32xf32>
    %25 = tpu.matmul %24, %1, %cst_14 {dimension_numbers = #tpu.dot_dimension_numbers<[1], [0], [0], [1], [0, 0, 1, 1], [], []>} : vector<8x12xf32>, vector<12x32xf32>, vector<8x32xf32> -> vector<8x32xf32>
    %26 = vector.broadcast %2 : vector<1x32xf32> to vector<8x32xf32>
    %27 = arith.addf %25, %26 : vector<8x32xf32>
    %28 = math.tanh %27 : vector<8x32xf32>
    %cst_15 = arith.constant dense<0.000000e+00> : vector<8x12xf32>
    %29 = tpu.matmul %28, %3, %cst_15 {dimension_numbers = #tpu.dot_dimension_numbers<[1], [0], [0], [1], [0, 0, 1, 1], [], []>} : vector<8x32xf32>, vector<32x12xf32>, vector<8x12xf32> -> vector<8x12xf32>
    %30 = vector.broadcast %4 : vector<1x12xf32> to vector<8x12xf32>
    %31 = arith.addf %29, %30 : vector<8x12xf32>
    %cst_16 = arith.constant 1.000000e-01 : f32
    %32 = vector.broadcast %cst_16 : f32 to vector<8x12xf32>
    %33 = arith.mulf %32, %31 : vector<8x12xf32>
    %34 = arith.addf %0, %33 : vector<8x12xf32>
    %cst_17 = arith.constant dense<0.000000e+00> : vector<8x32xf32>
    %35 = tpu.matmul %34, %1, %cst_17 {dimension_numbers = #tpu.dot_dimension_numbers<[1], [0], [0], [1], [0, 0, 1, 1], [], []>} : vector<8x12xf32>, vector<12x32xf32>, vector<8x32xf32> -> vector<8x32xf32>
    %36 = vector.broadcast %2 : vector<1x32xf32> to vector<8x32xf32>
    %37 = arith.addf %35, %36 : vector<8x32xf32>
    %38 = math.tanh %37 : vector<8x32xf32>
    %cst_18 = arith.constant dense<0.000000e+00> : vector<8x12xf32>
    %39 = tpu.matmul %38, %3, %cst_18 {dimension_numbers = #tpu.dot_dimension_numbers<[1], [0], [0], [1], [0, 0, 1, 1], [], []>} : vector<8x32xf32>, vector<32x12xf32>, vector<8x12xf32> -> vector<8x12xf32>
    %40 = vector.broadcast %4 : vector<1x12xf32> to vector<8x12xf32>
    %41 = arith.addf %39, %40 : vector<8x12xf32>
    %cst_19 = arith.constant 2.000000e+00 : f32
    %42 = vector.broadcast %cst_19 : f32 to vector<8x12xf32>
    %43 = arith.mulf %42, %21 : vector<8x12xf32>
    %44 = arith.addf %11, %43 : vector<8x12xf32>
    %cst_20 = arith.constant 2.000000e+00 : f32
    %45 = vector.broadcast %cst_20 : f32 to vector<8x12xf32>
    %46 = arith.mulf %45, %31 : vector<8x12xf32>
    %47 = arith.addf %44, %46 : vector<8x12xf32>
    %48 = arith.addf %47, %41 : vector<8x12xf32>
    %cst_21 = arith.constant 0.0166666675 : f32
    %49 = vector.broadcast %cst_21 : f32 to vector<8x12xf32>
    %50 = arith.mulf %49, %48 : vector<8x12xf32>
    %51 = arith.addf %0, %50 : vector<8x12xf32>
    %c0_22 = arith.constant 0 : index
    %c0_23 = arith.constant 0 : index
    %52 = vector.load %arg6[%c0_22, %c0_23] : memref<8x12xf32, #tpu.memory_space<vmem>>, vector<8x12xf32>
    tpu.vector_store %arg6[%c0_22, %c0_23], %51 {strides = array<i32>} : memref<8x12xf32, #tpu.memory_space<vmem>>, vector<8x12xf32>,
    return
  }
  func.func @transform_0(%arg0: i32) -> (i32, i32) {
    %c0_i32 = arith.constant 0 : i32
    %c0_i32_0 = arith.constant 0 : i32
    return %arg0, %c0_i32 : i32, i32
  }
  func.func @transform_1(%arg0: i32) -> (i32, i32) {
    %c0_i32 = arith.constant 0 : i32
    %c0_i32_0 = arith.constant 0 : i32
    %c0_i32_1 = arith.constant 0 : i32
    return %c0_i32, %c0_i32_0 : i32, i32
  }
  func.func @transform_2(%arg0: i32) -> (i32, i32) {
    %c0_i32 = arith.constant 0 : i32
    %c0_i32_0 = arith.constant 0 : i32
    %c0_i32_1 = arith.constant 0 : i32
    return %c0_i32, %c0_i32_0 : i32, i32
  }
  func.func @transform_3(%arg0: i32) -> (i32, i32) {
    %c0_i32 = arith.constant 0 : i32
    %c0_i32_0 = arith.constant 0 : i32
    %c0_i32_1 = arith.constant 0 : i32
    return %c0_i32, %c0_i32_0 : i32, i32
  }
  func.func @transform_4(%arg0: i32) -> (i32, i32) {
    %c0_i32 = arith.constant 0 : i32
    %c0_i32_0 = arith.constant 0 : i32
    %c0_i32_1 = arith.constant 0 : i32
    return %c0_i32, %c0_i32_0 : i32, i32
  }
  func.func @transform_5(%arg0: i32) -> (i32, i32) {
    %c0_i32 = arith.constant 0 : i32
    %c0_i32_0 = arith.constant 0 : i32
    return %arg0, %c0_i32 : i32, i32
  }
}

</mosaic_0001>

<llo_original>
// kernel: tpu_custom_call.1
$region0: #{tpu_custom_call.1}
  #allocation0 [shape = 'u32[]', space=smem, size = 0x4, offset = 0x4, fixed_abs, tag = 'smem constant byte address 0x4 - core index']
  #allocation1 [shape = 'u32[144,128]{1,0:T(1,128)}', space=vmem, size = 0x12000, scoped, tag = 'internal scratch']
  %s0 = inlined_call_operand.vmem [shape: f32[8,12], index: 0, kind: input, shape index: {}]
  %s1 = inlined_call_operand.vmem [shape: f32[12,32], index: 1, kind: input, shape index: {}]
  %s2 = inlined_call_operand.vmem [shape: f32[1,32], index: 2, kind: input, shape index: {}]
  %s3 = inlined_call_operand.vmem [shape: f32[32,12], index: 3, kind: input, shape index: {}]
  %s4 = inlined_call_operand.vmem [shape: f32[1,12], index: 4, kind: input, shape index: {}]
  %s5 = inlined_call_operand.hbm [shape: f32[8,12], index: 5, kind: output, shape index: {}]
  %s6 = sld [smem:[#allocation0]]
  $region30: #{tpu_custom_call.1} parent=0
    _
  %s8 = ssub.s32 1, %s6
  %s9 = scalar_select 0, %s8, %s6
  $region1: #{tpu_custom_call.1} parent=0
    #allocation2 [shape = 'u8[4096]{0}', space=vmem, size = 0x1000, scoped, tag = 'output window, operand 0, single buffered']
    #allocation3 [shape = 's32[1]{0}', space=sflag, size = 0x4, scoped, tag = 'scoped memory for tpu_custom_call.1']
    %10 = vsyncpa [#allocation3], 0
    // Predicated region
    $region2: #{tpu_custom_call.1} parent=1 // pred_check
      _
    $region3: #{tpu_custom_call.1} parent=1 // pred_check_branch
      %12 = sbr.rel (0) target = $region5
    $region4: #{tpu_custom_call.1} parent=1 // pred_region
      _
    $region5: #{tpu_custom_call.1} parent=1 // pred_fallthru
      _
    // Predicated region
    $region6: #{tpu_custom_call.1} parent=1 // pred_check
      _
    $region7: #{tpu_custom_call.1} parent=1 // pred_check_branch
      %14 = sbr.rel (0) target = $region9
    $region8: #{tpu_custom_call.1} parent=1 // pred_region
      _
    $region9: #{tpu_custom_call.1} parent=1 // pred_fallthru
      _
    // Predicated region
    $region10: #{tpu_custom_call.1} parent=1 // pred_check
      _
    $region11: #{tpu_custom_call.1} parent=1 // pred_check_branch
      %16 = sbr.rel (0) target = $region13
    $region12: #{tpu_custom_call.1} parent=1 // pred_region
      _
    $region13: #{tpu_custom_call.1} parent=1 // pred_fallthru
      _
    // Predicated region
    $region14: #{tpu_custom_call.1} parent=1 // pred_check
      _
    $region15: #{tpu_custom_call.1} parent=1 // pred_check_branch
      %18 = sbr.rel (0) target = $region17
    $region16: #{tpu_custom_call.1} parent=1 // pred_region
      _
    $region17: #{tpu_custom_call.1} parent=1 // pred_fallthru
      _
    // Predicated region
    $region18: #{tpu_custom_call.1} parent=1 // pred_check
      _
    $region19: #{tpu_custom_call.1} parent=1 // pred_check_branch
      %20 = sbr.rel (0) target = $region21
    $region20: #{tpu_custom_call.1} parent=1 // pred_region
      _
    $region21: #{tpu_custom_call.1} parent=1 // pred_fallthru
      _
    %v21 = vld [vmem:[%s0] sm:$0xff]
    %v22 = vld [vmem:[%s1] sm:$0xff]
    %v23 = vld [vmem:[%s1 + $0x8] sm:$0xf]
    %v24 = vld [vmem:[%s2] sm:$0x1]
    %v25 = vld [vmem:[%s3] sm:$0xff]
    %v26 = vld [vmem:[%s3 + $0x8] sm:$0xff]
    %v27 = vld [vmem:[%s3 + $0x10] sm:$0xff]
    %v28 = vld [vmem:[%s3 + $0x18] sm:$0xff]
    %v29 = vld [vmem:[%s4] sm:$0x1]
    %v31 = vlaneseq
    %v32 = vshrl.u32 %v31, 7
    %v33 = vsub.s32 0, %v32
    %v34 = vrot.slane %v24, %v33
    %vm36 = vcmask 97280
    %v38 = vsel %vm36, %v21, 0
    %vm40 = vcmask 1043456
    %v42 = vsel %vm40, %v23, 0
    %44 = vmatprep.subr.mxu0 0.0
    %45 = vmatpush1.msra.mxu0 0.0
    %46 = vmatprep.subr.mxu0 0.0
    %47 = vmatpush1.msra.mxu0 0.0
    %48 = vmatprep.subr.mxu0 0.0
    %49 = vmatpush1.msra.mxu0 0.0
    %50 = vmatprep.subr.mxu0 0.0
    %51 = vmatpush1.msra.mxu0 0.0
    %52 = vmatprep.subr.mxu0 0.0
    %53 = vmatpush1.msra.mxu0 0.0
    %54 = vmatprep.subr.mxu0 0.0
    %55 = vmatpush1.msra.mxu0 0.0
    %56 = vmatprep.subr.mxu0 0.0
    %57 = vmatpush1.msra.mxu0 0.0
    %58 = vmatprep.subr.mxu0 0.0
    %59 = vmatpush1.msra.mxu0 0.0
    %60 = vmatprep.subr.mxu0 0.0
    %61 = vmatpush1.msra.mxu0 0.0
    %62 = vmatprep.subr.mxu0 0.0
    %63 = vmatpush1.msra.mxu0 0.0
    %64 = vmatprep.subr.mxu0 0.0
    %65 = vmatpush1.msra.mxu0 0.0
    %66 = vmatprep.subr.mxu0 0.0
    %67 = vmatpush1.msra.mxu0 0.0
    %68 = vmatprep.subr.mxu0 0.0
    %69 = vmatpush1.msra.mxu0 0.0
    %70 = vmatprep.subr.mxu0 0.0
    %71 = vmatpush1.msra.mxu0 0.0
    %72 = vmatprep.subr.mxu0 0.0
    %73 = vmatpush1.msra.mxu0 %v42
    %74 = vmatprep.subr.mxu0 0.0
    %75 = vmatpush1.msra.mxu0 %v22
    %76 = vmatprep.subr.mxu0 0.0
    %77 = vmatpush2.msra.mxu0 0.0
    %78 = vmatprep.subr.mxu0 0.0
    %79 = vmatpush2.msra.mxu0 0.0
    %80 = vmatprep.subr.mxu0 0.0
    %81 = vmatpush2.msra.mxu0 0.0
    %82 = vmatprep.subr.mxu0 0.0
    %83 = vmatpush2.msra.mxu0 0.0
    %84 = vmatprep.subr.mxu0 0.0
    %85 = vmatpush2.msra.mxu0 0.0
    %86 = vmatprep.subr.mxu0 0.0
    %87 = vmatpush2.msra.mxu0 0.0
    %88 = vmatprep.subr.mxu0 0.0
    %89 = vmatpush2.msra.mxu0 0.0
    %90 = vmatprep.subr.mxu0 0.0
    %91 = vmatpush2.msra.mxu0 0.0
    %92 = vmatprep.subr.mxu0 0.0
    %93 = vmatpush2.msra.mxu0 0.0
    %94 = vmatprep.subr.mxu0 0.0
    %95 = vmatpush2.msra.mxu0 0.0
    %96 = vmatprep.subr.mxu0 0.0
    %97 = vmatpush2.msra.mxu0 0.0
    %98 = vmatprep.subr.mxu0 0.0
    %99 = vmatpush2.msra.mxu0 0.0
    %100 = vmatprep.subr.mxu0 0.0
    %101 = vmatpush2.msra.mxu0 0.0
    %102 = vmatprep.subr.mxu0 0.0
    %103 = vmatpush2.msra.mxu0 0.0
    %104 = vmatprep.subr.mxu0 0.0
    %105 = vmatpush2.msra.mxu0 0.0
    %106 = vmatprep.subr.mxu0 0.0
    %107 = vmatpush2.msra.mxu0 0.0
    %108 = vmatprep.mubr.f32.mxu0 0.0
    %109 = vmatmul.mubr.f32.gmra.mxu0 %v38
    %v110 = vpop.f32.mrf.mxu0
    %v111 = vadd.f32 %v34, %v110
    %v112 = vpop.f32.mrf.mxu0
    %113 = vdwg.mxu0
    %v114 = vtanh.pop %v111
    %v116 = vlaneseq
    %v117 = vshrl.u32 %v116, 7
    %v118 = vsub.s32 0, %v117
    %v119 = vrot.slane %v29, %v118
    %vm121 = vcmask 261120
    %v123 = vsel %vm121, %v114, 0
    %125 = vmatprep.subr.mxu0 0.0
    %126 = vmatpush1.msra.mxu0 0.0
    %127 = vmatprep.subr.mxu0 0.0
    %128 = vmatpush1.msra.mxu0 0.0
    %129 = vmatprep.subr.mxu0 0.0
    %130 = vmatpush1.msra.mxu0 0.0
    %131 = vmatprep.subr.mxu0 0.0
    %132 = vmatpush1.msra.mxu0 0.0
    %133 = vmatprep.subr.mxu0 0.0
    %134 = vmatpush1.msra.mxu0 0.0
    %135 = vmatprep.subr.mxu0 0.0
    %136 = vmatpush1.msra.mxu0 0.0
    %137 = vmatprep.subr.mxu0 0.0
    %138 = vmatpush1.msra.mxu0 0.0
    %139 = vmatprep.subr.mxu0 0.0
    %140 = vmatpush1.msra.mxu0 0.0
    %141 = vmatprep.subr.mxu0 0.0
    %142 = vmatpush1.msra.mxu0 0.0
    %143 = vmatprep.subr.mxu0 0.0
    %144 = vmatpush1.msra.mxu0 0.0
    %145 = vmatprep.subr.mxu0 0.0
    %146 = vmatpush1.msra.mxu0 0.0
    %147 = vmatprep.subr.mxu0 0.0
    %148 = vmatpush1.msra.mxu0 0.0
    %149 = vmatprep.subr.mxu0 0.0
    %150 = vmatpush1.msra.mxu0 %v28
    %151 = vmatprep.subr.mxu0 0.0
    %152 = vmatpush1.msra.mxu0 %v27
    %153 = vmatprep.subr.mxu0 0.0
    %154 = vmatpush1.msra.mxu0 %v26
    %155 = vmatprep.subr.mxu0 0.0
    %156 = vmatpush1.msra.mxu0 %v25
    %157 = vmatprep.subr.mxu0 0.0
    %158 = vmatpush2.msra.mxu0 0.0
    %159 = vmatprep.subr.mxu0 0.0
    %160 = vmatpush2.msra.mxu0 0.0
    %161 = vmatprep.subr.mxu0 0.0
    %162 = vmatpush2.msra.mxu0 0.0
    %163 = vmatprep.subr.mxu0 0.0
    %164 = vmatpush2.msra.mxu0 0.0
    %165 = vmatprep.subr.mxu0 0.0
    %166 = vmatpush2.msra.mxu0 0.0
    %167 = vmatprep.subr.mxu0 0.0
    %168 = vmatpush2.msra.mxu0 0.0
    %169 = vmatprep.subr.mxu0 0.0
    %170 = vmatpush2.msra.mxu0 0.0
    %171 = vmatprep.subr.mxu0 0.0
    %172 = vmatpush2.msra.mxu0 0.0
    %173 = vmatprep.subr.mxu0 0.0
    %174 = vmatpush2.msra.mxu0 0.0
    %175 = vmatprep.subr.mxu0 0.0
    %176 = vmatpush2.msra.mxu0 0.0
    %177 = vmatprep.subr.mxu0 0.0
    %178 = vmatpush2.msra.mxu0 0.0
    %179 = vmatprep.subr.mxu0 0.0
    %180 = vmatpush2.msra.mxu0 0.0
    %181 = vmatprep.subr.mxu0 0.0
    %182 = vmatpush2.msra.mxu0 0.0
    %183 = vmatprep.subr.mxu0 0.0
    %184 = vmatpush2.msra.mxu0 0.0
    %185 = vmatprep.subr.mxu0 0.0
    %186 = vmatpush2.msra.mxu0 0.0
    %187 = vmatprep.subr.mxu0 0.0
    %188 = vmatpush2.msra.mxu0 0.0
    %189 = vmatprep.mubr.f32.mxu0 0.0
    %190 = vmatmul.mubr.f32.gmra.mxu0 %v123
    %v191 = vpop.f32.mrf.mxu0
    %v192 = vadd.f32 %v119, %v191
    %v193 = vpop.f32.mrf.mxu0
    %194 = vdwg.mxu0
    %v195 = vmul.f32 %v192, 0.05
    %v196 = vadd.f32 %v21, %v195
    %v198 = vsel %vm36, %v196, 0
    %200 = vmatprep.subr.mxu0 0.0
    %201 = vmatpush1.msra.mxu0 0.0
    %202 = vmatprep.subr.mxu0 0.0
    %203 = vmatpush1.msra.mxu0 0.0
    %204 = vmatprep.subr.mxu0 0.0
    %205 = vmatpush1.msra.mxu0 0.0
    %206 = vmatprep.subr.mxu0 0.0
    %207 = vmatpush1.msra.mxu0 0.0
    %208 = vmatprep.subr.mxu0 0.0
    %209 = vmatpush1.msra.mxu0 0.0
    %210 = vmatprep.subr.mxu0 0.0
    %211 = vmatpush1.msra.mxu0 0.0
    %212 = vmatprep.subr.mxu0 0.0
    %213 = vmatpush1.msra.mxu0 0.0
    %214 = vmatprep.subr.mxu0 0.0
    %215 = vmatpush1.msra.mxu0 0.0
    %216 = vmatprep.subr.mxu0 0.0
    %217 = vmatpush1.msra.mxu0 0.0
    %218 = vmatprep.subr.mxu0 0.0
    %219 = vmatpush1.msra.mxu0 0.0
    %220 = vmatprep.subr.mxu0 0.0
    %221 = vmatpush1.msra.mxu0 0.0
    %222 = vmatprep.subr.mxu0 0.0
    %223 = vmatpush1.msra.mxu0 0.0
    %224 = vmatprep.subr.mxu0 0.0
    %225 = vmatpush1.msra.mxu0 0.0
    %226 = vmatprep.subr.mxu0 0.0
    %227 = vmatpush1.msra.mxu0 0.0
    %228 = vmatprep.subr.mxu0 0.0
    %229 = vmatpush1.msra.mxu0 %v42
    %230 = vmatprep.subr.mxu0 0.0
    %231 = vmatpush1.msra.mxu0 %v22
    %232 = vmatprep.subr.mxu0 0.0
    %233 = vmatpush2.msra.mxu0 0.0
    %234 = vmatprep.subr.mxu0 0.0
    %235 = vmatpush2.msra.mxu0 0.0
    %236 = vmatprep.subr.mxu0 0.0
    %237 = vmatpush2.msra.mxu0 0.0
    %238 = vmatprep.subr.mxu0 0.0
    %239 = vmatpush2.msra.mxu0 0.0
    %240 = vmatprep.subr.mxu0 0.0
    %241 = vmatpush2.msra.mxu0 0.0
    %242 = vmatprep.subr.mxu0 0.0
    %243 = vmatpush2.msra.mxu0 0.0
    %244 = vmatprep.subr.mxu0 0.0
    %245 = vmatpush2.msra.mxu0 0.0
    %246 = vmatprep.subr.mxu0 0.0
    %247 = vmatpush2.msra.mxu0 0.0
    %248 = vmatprep.subr.mxu0 0.0
    %249 = vmatpush2.msra.mxu0 0.0
    %250 = vmatprep.subr.mxu0 0.0
    %251 = vmatpush2.msra.mxu0 0.0
    %252 = vmatprep.subr.mxu0 0.0
    %253 = vmatpush2.msra.mxu0 0.0
    %254 = vmatprep.subr.mxu0 0.0
    %255 = vmatpush2.msra.mxu0 0.0
    %256 = vmatprep.subr.mxu0 0.0
    %257 = vmatpush2.msra.mxu0 0.0
    %258 = vmatprep.subr.mxu0 0.0
    %259 = vmatpush2.msra.mxu0 0.0
    %260 = vmatprep.subr.mxu0 0.0
    %261 = vmatpush2.msra.mxu0 0.0
    %262 = vmatprep.subr.mxu0 0.0
    %263 = vmatpush2.msra.mxu0 0.0
    %264 = vmatprep.mubr.f32.mxu0 0.0
    %265 = vmatmul.mubr.f32.gmra.mxu0 %v198
    %v266 = vpop.f32.mrf.mxu0
    %v267 = vadd.f32 %v34, %v266
    %v268 = vpop.f32.mrf.mxu0
    %269 = vdwg.mxu0
    %v270 = vtanh.pop %v267
    %v272 = vsel %vm121, %v270, 0
    %274 = vmatprep.subr.mxu0 0.0
    %275 = vmatpush1.msra.mxu0 0.0
    %276 = vmatprep.subr.mxu0 0.0
    %277 = vmatpush1.msra.mxu0 0.0
    %278 = vmatprep.subr.mxu0 0.0
    %279 = vmatpush1.msra.mxu0 0.0
    %280 = vmatprep.subr.mxu0 0.0
    %281 = vmatpush1.msra.mxu0 0.0
    %282 = vmatprep.subr.mxu0 0.0
    %283 = vmatpush1.msra.mxu0 0.0
    %284 = vmatprep.subr.mxu0 0.0
    %285 = vmatpush1.msra.mxu0 0.0
    %286 = vmatprep.subr.mxu0 0.0
    %287 = vmatpush1.msra.mxu0 0.0
    %288 = vmatprep.subr.mxu0 0.0
    %289 = vmatpush1.msra.mxu0 0.0
    %290 = vmatprep.subr.mxu0 0.0
    %291 = vmatpush1.msra.mxu0 0.0
    %292 = vmatprep.subr.mxu0 0.0
    %293 = vmatpush1.msra.mxu0 0.0
    %294 = vmatprep.subr.mxu0 0.0
    %295 = vmatpush1.msra.mxu0 0.0
    %296 = vmatprep.subr.mxu0 0.0
    %297 = vmatpush1.msra.mxu0 0.0
    %298 = vmatprep.subr.mxu0 0.0
    %299 = vmatpush1.msra.mxu0 %v28
    %300 = vmatprep.subr.mxu0 0.0
    %301 = vmatpush1.msra.mxu0 %v27
    %302 = vmatprep.subr.mxu0 0.0
    %303 = vmatpush1.msra.mxu0 %v26
    %304 = vmatprep.subr.mxu0 0.0
    %305 = vmatpush1.msra.mxu0 %v25
    %306 = vmatprep.subr.mxu0 0.0
    %307 = vmatpush2.msra.mxu0 0.0
    %308 = vmatprep.subr.mxu0 0.0
    %309 = vmatpush2.msra.mxu0 0.0
    %310 = vmatprep.subr.mxu0 0.0
    %311 = vmatpush2.msra.mxu0 0.0
    %312 = vmatprep.subr.mxu0 0.0
    %313 = vmatpush2.msra.mxu0 0.0
    %314 = vmatprep.subr.mxu0 0.0
    %315 = vmatpush2.msra.mxu0 0.0
    %316 = vmatprep.subr.mxu0 0.0
    %317 = vmatpush2.msra.mxu0 0.0
    %318 = vmatprep.subr.mxu0 0.0
    %319 = vmatpush2.msra.mxu0 0.0
    %320 = vmatprep.subr.mxu0 0.0
    %321 = vmatpush2.msra.mxu0 0.0
    %322 = vmatprep.subr.mxu0 0.0
    %323 = vmatpush2.msra.mxu0 0.0
    %324 = vmatprep.subr.mxu0 0.0
    %325 = vmatpush2.msra.mxu0 0.0
    %326 = vmatprep.subr.mxu0 0.0
    %327 = vmatpush2.msra.mxu0 0.0
    %328 = vmatprep.subr.mxu0 0.0
    %329 = vmatpush2.msra.mxu0 0.0
    %330 = vmatprep.subr.mxu0 0.0
    %331 = vmatpush2.msra.mxu0 0.0
    %332 = vmatprep.subr.mxu0 0.0
    %333 = vmatpush2.msra.mxu0 0.0
    %334 = vmatprep.subr.mxu0 0.0
    %335 = vmatpush2.msra.mxu0 0.0
    %336 = vmatprep.subr.mxu0 0.0
    %337 = vmatpush2.msra.mxu0 0.0
    %338 = vmatprep.mubr.f32.mxu0 0.0
    %339 = vmatmul.mubr.f32.gmra.mxu0 %v272
    %v340 = vpop.f32.mrf.mxu0
    %v341 = vadd.f32 %v119, %v340
    %v342 = vpop.f32.mrf.mxu0
    %343 = vdwg.mxu0
    %v344 = vmul.f32 %v341, 0.05
    %v345 = vadd.f32 %v21, %v344
    %v347 = vsel %vm36, %v345, 0
    %349 = vmatprep.subr.mxu0 0.0
    %350 = vmatpush1.msra.mxu0 0.0
    %351 = vmatprep.subr.mxu0 0.0
    %352 = vmatpush1.msra.mxu0 0.0
    %353 = vmatprep.subr.mxu0 0.0
    %354 = vmatpush1.msra.mxu0 0.0
    %355 = vmatprep.subr.mxu0 0.0
    %356 = vmatpush1.msra.mxu0 0.0
    %357 = vmatprep.subr.mxu0 0.0
    %358 = vmatpush1.msra.mxu0 0.0
    %359 = vmatprep.subr.mxu0 0.0
    %360 = vmatpush1.msra.mxu0 0.0
    %361 = vmatprep.subr.mxu0 0.0
    %362 = vmatpush1.msra.mxu0 0.0
    %363 = vmatprep.subr.mxu0 0.0
    %364 = vmatpush1.msra.mxu0 0.0
    %365 = vmatprep.subr.mxu0 0.0
    %366 = vmatpush1.msra.mxu0 0.0
    %367 = vmatprep.subr.mxu0 0.0
    %368 = vmatpush1.msra.mxu0 0.0
    %369 = vmatprep.subr.mxu0 0.0
    %370 = vmatpush1.msra.mxu0 0.0
    %371 = vmatprep.subr.mxu0 0.0
    %372 = vmatpush1.msra.mxu0 0.0
    %373 = vmatprep.subr.mxu0 0.0
    %374 = vmatpush1.msra.mxu0 0.0
    %375 = vmatprep.subr.mxu0 0.0
    %376 = vmatpush1.msra.mxu0 0.0
    %377 = vmatprep.subr.mxu0 0.0
    %378 = vmatpush1.msra.mxu0 %v42
    %379 = vmatprep.subr.mxu0 0.0
    %380 = vmatpush1.msra.mxu0 %v22
    %381 = vmatprep.subr.mxu0 0.0
    %382 = vmatpush2.msra.mxu0 0.0
    %383 = vmatprep.subr.mxu0 0.0
    %384 = vmatpush2.msra.mxu0 0.0
    %385 = vmatprep.subr.mxu0 0.0
    %386 = vmatpush2.msra.mxu0 0.0
    %387 = vmatprep.subr.mxu0 0.0
    %388 = vmatpush2.msra.mxu0 0.0
    %389 = vmatprep.subr.mxu0 0.0
    %390 = vmatpush2.msra.mxu0 0.0
    %391 = vmatprep.subr.mxu0 0.0
    %392 = vmatpush2.msra.mxu0 0.0
    %393 = vmatprep.subr.mxu0 0.0
    %394 = vmatpush2.msra.mxu0 0.0
    %395 = vmatprep.subr.mxu0 0.0
    %396 = vmatpush2.msra.mxu0 0.0
    %397 = vmatprep.subr.mxu0 0.0
    %398 = vmatpush2.msra.mxu0 0.0
    %399 = vmatprep.subr.mxu0 0.0
    %400 = vmatpush2.msra.mxu0 0.0
    %401 = vmatprep.subr.mxu0 0.0
    %402 = vmatpush2.msra.mxu0 0.0
    %403 = vmatprep.subr.mxu0 0.0
    %404 = vmatpush2.msra.mxu0 0.0
    %405 = vmatprep.subr.mxu0 0.0
    %406 = vmatpush2.msra.mxu0 0.0
    %407 = vmatprep.subr.mxu0 0.0
    %408 = vmatpush2.msra.mxu0 0.0
    %409 = vmatprep.subr.mxu0 0.0
    %410 = vmatpush2.msra.mxu0 0.0
    %411 = vmatprep.subr.mxu0 0.0
    %412 = vmatpush2.msra.mxu0 0.0
    %413 = vmatprep.mubr.f32.mxu0 0.0
    %414 = vmatmul.mubr.f32.gmra.mxu0 %v347
    %v415 = vpop.f32.mrf.mxu0
    %v416 = vadd.f32 %v34, %v415
    %v417 = vpop.f32.mrf.mxu0
    %418 = vdwg.mxu0
    %v419 = vtanh.pop %v416
    %v421 = vsel %vm121, %v419, 0
    %423 = vmatprep.subr.mxu0 0.0
    %424 = vmatpush1.msra.mxu0 0.0
    %425 = vmatprep.subr.mxu0 0.0
    %426 = vmatpush1.msra.mxu0 0.0
    %427 = vmatprep.subr.mxu0 0.0
    %428 = vmatpush1.msra.mxu0 0.0
    %429 = vmatprep.subr.mxu0 0.0
    %430 = vmatpush1.msra.mxu0 0.0
    %431 = vmatprep.subr.mxu0 0.0
    %432 = vmatpush1.msra.mxu0 0.0
    %433 = vmatprep.subr.mxu0 0.0
    %434 = vmatpush1.msra.mxu0 0.0
    %435 = vmatprep.subr.mxu0 0.0
    %436 = vmatpush1.msra.mxu0 0.0
    %437 = vmatprep.subr.mxu0 0.0
    %438 = vmatpush1.msra.mxu0 0.0
    %439 = vmatprep.subr.mxu0 0.0
    %440 = vmatpush1.msra.mxu0 0.0
    %441 = vmatprep.subr.mxu0 0.0
    %442 = vmatpush1.msra.mxu0 0.0
    %443 = vmatprep.subr.mxu0 0.0
    %444 = vmatpush1.msra.mxu0 0.0
    %445 = vmatprep.subr.mxu0 0.0
    %446 = vmatpush1.msra.mxu0 0.0
    %447 = vmatprep.subr.mxu0 0.0
    %448 = vmatpush1.msra.mxu0 %v28
    %449 = vmatprep.subr.mxu0 0.0
    %450 = vmatpush1.msra.mxu0 %v27
    %451 = vmatprep.subr.mxu0 0.0
    %452 = vmatpush1.msra.mxu0 %v26
    %453 = vmatprep.subr.mxu0 0.0
    %454 = vmatpush1.msra.mxu0 %v25
    %455 = vmatprep.subr.mxu0 0.0
    %456 = vmatpush2.msra.mxu0 0.0
    %457 = vmatprep.subr.mxu0 0.0
    %458 = vmatpush2.msra.mxu0 0.0
    %459 = vmatprep.subr.mxu0 0.0
    %460 = vmatpush2.msra.mxu0 0.0
    %461 = vmatprep.subr.mxu0 0.0
    %462 = vmatpush2.msra.mxu0 0.0
    %463 = vmatprep.subr.mxu0 0.0
    %464 = vmatpush2.msra.mxu0 0.0
    %465 = vmatprep.subr.mxu0 0.0
    %466 = vmatpush2.msra.mxu0 0.0
    %467 = vmatprep.subr.mxu0 0.0
    %468 = vmatpush2.msra.mxu0 0.0
    %469 = vmatprep.subr.mxu0 0.0
    %470 = vmatpush2.msra.mxu0 0.0
    %471 = vmatprep.subr.mxu0 0.0
    %472 = vmatpush2.msra.mxu0 0.0
    %473 = vmatprep.subr.mxu0 0.0
    %474 = vmatpush2.msra.mxu0 0.0
    %475 = vmatprep.subr.mxu0 0.0
    %476 = vmatpush2.msra.mxu0 0.0
    %477 = vmatprep.subr.mxu0 0.0
    %478 = vmatpush2.msra.mxu0 0.0
    %479 = vmatprep.subr.mxu0 0.0
    %480 = vmatpush2.msra.mxu0 0.0
    %481 = vmatprep.subr.mxu0 0.0
    %482 = vmatpush2.msra.mxu0 0.0
    %483 = vmatprep.subr.mxu0 0.0
    %484 = vmatpush2.msra.mxu0 0.0
    %485 = vmatprep.subr.mxu0 0.0
    %486 = vmatpush2.msra.mxu0 0.0
    %487 = vmatprep.mubr.f32.mxu0 0.0
    %488 = vmatmul.mubr.f32.gmra.mxu0 %v421
    %v489 = vpop.f32.mrf.mxu0
    %v490 = vadd.f32 %v119, %v489
    %v491 = vpop.f32.mrf.mxu0
    %492 = vdwg.mxu0
    %v493 = vmul.f32 %v490, 0.1
    %v494 = vadd.f32 %v21, %v493
    %v496 = vsel %vm36, %v494, 0
    %498 = vmatprep.subr.mxu0 0.0
    %499 = vmatpush1.msra.mxu0 0.0
    %500 = vmatprep.subr.mxu0 0.0
    %501 = vmatpush1.msra.mxu0 0.0
    %502 = vmatprep.subr.mxu0 0.0
    %503 = vmatpush1.msra.mxu0 0.0
    %504 = vmatprep.subr.mxu0 0.0
    %505 = vmatpush1.msra.mxu0 0.0
    %506 = vmatprep.subr.mxu0 0.0
    %507 = vmatpush1.msra.mxu0 0.0
    %508 = vmatprep.subr.mxu0 0.0
    %509 = vmatpush1.msra.mxu0 0.0
    %510 = vmatprep.subr.mxu0 0.0
    %511 = vmatpush1.msra.mxu0 0.0
    %512 = vmatprep.subr.mxu0 0.0
    %513 = vmatpush1.msra.mxu0 0.0
    %514 = vmatprep.subr.mxu0 0.0
    %515 = vmatpush1.msra.mxu0 0.0
    %516 = vmatprep.subr.mxu0 0.0
    %517 = vmatpush1.msra.mxu0 0.0
    %518 = vmatprep.subr.mxu0 0.0
    %519 = vmatpush1.msra.mxu0 0.0
    %520 = vmatprep.subr.mxu0 0.0
    %521 = vmatpush1.msra.mxu0 0.0
    %522 = vmatprep.subr.mxu0 0.0
    %523 = vmatpush1.msra.mxu0 0.0
    %524 = vmatprep.subr.mxu0 0.0
    %525 = vmatpush1.msra.mxu0 0.0
    %526 = vmatprep.subr.mxu0 0.0
    %527 = vmatpush1.msra.mxu0 %v42
    %528 = vmatprep.subr.mxu0 0.0
    %529 = vmatpush1.msra.mxu0 %v22
    %530 = vmatprep.subr.mxu0 0.0
    %531 = vmatpush2.msra.mxu0 0.0
    %532 = vmatprep.subr.mxu0 0.0
    %533 = vmatpush2.msra.mxu0 0.0
    %534 = vmatprep.subr.mxu0 0.0
    %535 = vmatpush2.msra.mxu0 0.0
    %536 = vmatprep.subr.mxu0 0.0
    %537 = vmatpush2.msra.mxu0 0.0
    %538 = vmatprep.subr.mxu0 0.0
    %539 = vmatpush2.msra.mxu0 0.0
    %540 = vmatprep.subr.mxu0 0.0
    %541 = vmatpush2.msra.mxu0 0.0
    %542 = vmatprep.subr.mxu0 0.0
    %543 = vmatpush2.msra.mxu0 0.0
    %544 = vmatprep.subr.mxu0 0.0
    %545 = vmatpush2.msra.mxu0 0.0
    %546 = vmatprep.subr.mxu0 0.0
    %547 = vmatpush2.msra.mxu0 0.0
    %548 = vmatprep.subr.mxu0 0.0
    %549 = vmatpush2.msra.mxu0 0.0
    %550 = vmatprep.subr.mxu0 0.0
    %551 = vmatpush2.msra.mxu0 0.0
    %552 = vmatprep.subr.mxu0 0.0
    %553 = vmatpush2.msra.mxu0 0.0
    %554 = vmatprep.subr.mxu0 0.0
    %555 = vmatpush2.msra.mxu0 0.0
    %556 = vmatprep.subr.mxu0 0.0
    %557 = vmatpush2.msra.mxu0 0.0
    %558 = vmatprep.subr.mxu0 0.0
    %559 = vmatpush2.msra.mxu0 0.0
    %560 = vmatprep.subr.mxu0 0.0
    %561 = vmatpush2.msra.mxu0 0.0
    %562 = vmatprep.mubr.f32.mxu0 0.0
    %563 = vmatmul.mubr.f32.gmra.mxu0 %v496
    %v564 = vpop.f32.mrf.mxu0
    %v565 = vadd.f32 %v34, %v564
    %v566 = vpop.f32.mrf.mxu0
    %567 = vdwg.mxu0
    %v568 = vtanh.pop %v565
    %v570 = vsel %vm121, %v568, 0
    %572 = vmatprep.subr.mxu0 0.0
    %573 = vmatpush1.msra.mxu0 0.0
    %574 = vmatprep.subr.mxu0 0.0
    %575 = vmatpush1.msra.mxu0 0.0
    %576 = vmatprep.subr.mxu0 0.0
    %577 = vmatpush1.msra.mxu0 0.0
    %578 = vmatprep.subr.mxu0 0.0
    %579 = vmatpush1.msra.mxu0 0.0
    %580 = vmatprep.subr.mxu0 0.0
    %581 = vmatpush1.msra.mxu0 0.0
    %582 = vmatprep.subr.mxu0 0.0
    %583 = vmatpush1.msra.mxu0 0.0
    %584 = vmatprep.subr.mxu0 0.0
    %585 = vmatpush1.msra.mxu0 0.0
    %586 = vmatprep.subr.mxu0 0.0
    %587 = vmatpush1.msra.mxu0 0.0
    %588 = vmatprep.subr.mxu0 0.0
    %589 = vmatpush1.msra.mxu0 0.0
    %590 = vmatprep.subr.mxu0 0.0
    %591 = vmatpush1.msra.mxu0 0.0
    %592 = vmatprep.subr.mxu0 0.0
    %593 = vmatpush1.msra.mxu0 0.0
    %594 = vmatprep.subr.mxu0 0.0
    %595 = vmatpush1.msra.mxu0 0.0
    %596 = vmatprep.subr.mxu0 0.0
    %597 = vmatpush1.msra.mxu0 %v28
    %598 = vmatprep.subr.mxu0 0.0
    %599 = vmatpush1.msra.mxu0 %v27
    %600 = vmatprep.subr.mxu0 0.0
    %601 = vmatpush1.msra.mxu0 %v26
    %602 = vmatprep.subr.mxu0 0.0
    %603 = vmatpush1.msra.mxu0 %v25
    %604 = vmatprep.subr.mxu0 0.0
    %605 = vmatpush2.msra.mxu0 0.0
    %606 = vmatprep.subr.mxu0 0.0
    %607 = vmatpush2.msra.mxu0 0.0
    %608 = vmatprep.subr.mxu0 0.0
    %609 = vmatpush2.msra.mxu0 0.0
    %610 = vmatprep.subr.mxu0 0.0
    %611 = vmatpush2.msra.mxu0 0.0
    %612 = vmatprep.subr.mxu0 0.0
    %613 = vmatpush2.msra.mxu0 0.0
    %614 = vmatprep.subr.mxu0 0.0
    %615 = vmatpush2.msra.mxu0 0.0
    %616 = vmatprep.subr.mxu0 0.0
    %617 = vmatpush2.msra.mxu0 0.0
    %618 = vmatprep.subr.mxu0 0.0
    %619 = vmatpush2.msra.mxu0 0.0
    %620 = vmatprep.subr.mxu0 0.0
    %621 = vmatpush2.msra.mxu0 0.0
    %622 = vmatprep.subr.mxu0 0.0
    %623 = vmatpush2.msra.mxu0 0.0
    %624 = vmatprep.subr.mxu0 0.0
    %625 = vmatpush2.msra.mxu0 0.0
    %626 = vmatprep.subr.mxu0 0.0
    %627 = vmatpush2.msra.mxu0 0.0
    %628 = vmatprep.subr.mxu0 0.0
    %629 = vmatpush2.msra.mxu0 0.0
    %630 = vmatprep.subr.mxu0 0.0
    %631 = vmatpush2.msra.mxu0 0.0
    %632 = vmatprep.subr.mxu0 0.0
    %633 = vmatpush2.msra.mxu0 0.0
    %634 = vmatprep.subr.mxu0 0.0
    %635 = vmatpush2.msra.mxu0 0.0
    %636 = vmatprep.mubr.f32.mxu0 0.0
    %637 = vmatmul.mubr.f32.gmra.mxu0 %v570
    %v638 = vpop.f32.mrf.mxu0
    %v639 = vadd.f32 %v119, %v638
    %v640 = vpop.f32.mrf.mxu0
    %641 = vdwg.mxu0
    %v642 = vmul.f32 %v341, 2.0
    %v643 = vadd.f32 %v192, %v642
    %v644 = vmul.f32 %v490, 2.0
    %v645 = vadd.f32 %v643, %v644
    %v646 = vadd.f32 %v645, %v639
    %v647 = vmul.f32 %v646, 0.016666668
    %v648 = vadd.f32 %v21, %v647
    %649 = vst.msk [vmem:[#allocation2] sm:$0xff] %vm36, %v648
    // Predicated region
    $region22: #{tpu_custom_call.1} parent=1 // pred_check
      _
    $region23: #{tpu_custom_call.1} parent=1 // pred_check_branch
      %651 = sbr.rel (0) target = $region25
    $region24: #{tpu_custom_call.1} parent=1 // pred_region
      %s653 = ssub.s32 128, 128
      %654 = vsyncadd [#allocation3], %s653
      %s656 = sshll.u32 [#allocation2], 4
      %s657 = int_to_ptr.vmem [resolvable:$true] %s656
      %659 = dma.vmem_to_hbm [thread:$0]  %s657, 128, %s5, [#allocation3]
    $region25: #{tpu_custom_call.1} parent=1 // pred_fallthru
      _
    // Predicated region
    $region26: #{tpu_custom_call.1} parent=1 // pred_check
      _
    $region27: #{tpu_custom_call.1} parent=1 // pred_check_branch
      %661 = sbr.rel (0) target = $region29
    $region28: #{tpu_custom_call.1} parent=1 // pred_region
      %662 = dma.done [#allocation3], 128
    $region29: #{tpu_custom_call.1} parent=1 // pred_fallthru
      _
    %663 = vsyncpa [#allocation3], 1

</llo_original>
